<compile_context>
chip_gen: v7x
topology: tpu7x:2x2x1
jax: 0.10.0
libtpu: 0.0.40
codegen_flags: <defaults>
</compile_context>

<pallas_src>
import jax
import jax.numpy as jnp
from jax.experimental import pallas as pl
from jax.experimental.pallas import tpu as pltpu

NEG_SLOPE = 0.01   # nn.LeakyReLU default
EPS = 1e-5         # nn.InstanceNorm3d default


def _cdiv(a, b):
    return -(-a // b)


def _round_up(x, m):
    return _cdiv(x, m) * m


def _vmem_capacity_bytes():
    """Per-TensorCore VMEM capacity; conservative fallback if unavailable."""
    try:
        cap = getattr(pltpu.get_tpu_info(), "vmem_capacity_bytes", None)
        if cap:
            return int(cap)
    except Exception:
        pass
    return 64 << 20   # v7x per-TC VMEM; safe lower bound for v5e/v6e as well


def _plan_spatial_tiles(S, Cl, Ch, K, out_bytes, cap):
    """Pick lane-tile size tS (multiple of 128) and padded spatial extent S_pad.

    Double-buffered per-tile working set (bytes per lane):
        2 * 4 * (Cl + Ch)        x_low + x_high input blocks (f32)
      + 2 * out_bytes * K * Ch   the 8x output block
      + 4 * 4 * Ch               h / hn f32 intermediates + headroom
    budgeted at ~35% of this generation's VMEM, so v5e/v6e (128 MiB) get
    multi-thousand-lane tiles while v7x (64 MiB/TC) keeps pipelining headroom.
    """
    per_lane = 2 * 4 * (Cl + Ch) + 2 * out_bytes * K * Ch + 4 * 4 * Ch
    budget = int(0.35 * _vmem_capacity_bytes())
    limit = max(128, min(cap, budget // max(per_lane, 1)))
    limit = max(128, (limit // 128) * 128)
    n_tiles = _cdiv(S, limit)
    tS = _round_up(_cdiv(S, n_tiles), 128)
    S_pad = tS * n_tiles
    return tS, S_pad, per_lane * tS


def up_stats_kernel(xl_ref, w1_ref, sum_ref, sq_ref):
    # Pass 1: accumulate per-channel sum / sum-of-squares of h = W1 @ x_low
    # across the spatial tiles owned by this (batch, split) grid cell.
    @pl.when(pl.program_id(2) == 0)
    def _():
        sum_ref[...] = jnp.zeros_like(sum_ref)
        sq_ref[...] = jnp.zeros_like(sq_ref)

    h = jnp.dot(w1_ref[...], xl_ref[0].astype(jnp.bfloat16),
                preferred_element_type=jnp.float32)           # (Ch, tS) f32
    sum_ref[0] += jnp.sum(h, axis=1, keepdims=True)           # (Ch, 1)
    sq_ref[0] += jnp.sum(h * h, axis=1, keepdims=True)        # (Ch, 1)


def up_main_kernel(xl_ref, xh_ref, scale_ref, shift_ref, w1_ref, wt_ref, bt_ref,
                   o_ref):
    # Pass 2: recompute h for this tile, apply the precomputed (scale, shift)
    # InstanceNorm affine, LeakyReLU, skip-add, then one matmul emits all 8
    # non-overlapping transposed-conv taps; f32 accumulation, bf16 store.
    h = jnp.dot(w1_ref[...], xl_ref[0].astype(jnp.bfloat16),
                preferred_element_type=jnp.float32)           # (Ch, tS) f32
    hn = h * scale_ref[0] + shift_ref[0]
    hn = jnp.where(hn >= 0, hn, NEG_SLOPE * hn)               # LeakyReLU
    hn = hn + xh_ref[0]                                       # fusion 'add' (f32)
    o = jnp.dot(wt_ref[...], hn.astype(jnp.bfloat16),
                preferred_element_type=jnp.float32) + bt_ref[...]
    # NOTE: '+ bt' stays a VPU broadcast-add: the kernel is HBM-bound so it is
    # hidden under the output DMA; folding it into the contraction would need a
    # sublane concat / channel pad that costs more than it saves here.
    o_ref[0] = o.astype(o_ref.dtype)                          # (K*Ch, tS) bf16


def up_forward(x_low, x_high, params, *, stride=2, spatial_tile_cap=16384,
               out_dtype=jnp.bfloat16):
    """Pallas implementation of Up.forward (num_conv=1, fusion_mode='add')."""
    B, Cl, D, H, W = x_low.shape
    Ch = x_high.shape[1]
    S = D * H * W
    K = stride ** 3

    # NCDHW is already channels-first: (B, C, S) is a pure reshape.
    xl = x_low.reshape(B, Cl, S)
    xh = x_high.reshape(B, Ch, S)

    # Conv3d weight (Ch, Cl, 1, 1, 1) -> (Ch, Cl), bf16 MXU operand.  Its bias
    # b1 is dropped: the InstanceNorm mean subtraction cancels it exactly.
    w1 = params["w1"].reshape(Ch, Cl).astype(jnp.bfloat16)
    gamma = params["gamma"].reshape(1, Ch, 1).astype(jnp.float32)
    beta = params["beta"].reshape(1, Ch, 1).astype(jnp.float32)

    # ConvTranspose3d weight (Cin=Ch, Cout=Ch, kd, kh, kw) -> (K*Ch, Ch) with
    # rows ordered (co, kd, kh, kw) so each output channel's 8 tap planes stay
    # contiguous for the final permute; bias replicated per tap row.
    wt2 = jnp.transpose(params["wt"], (1, 2, 3, 4, 0)).reshape(K * Ch, Ch)
    wt2 = wt2.astype(jnp.bfloat16)
    bt = jnp.repeat(params["bt"].astype(jnp.float32), K).reshape(K * Ch, 1)

    out_bytes = jnp.dtype(out_dtype).itemsize
    tS, S_pad, working_set = _plan_spatial_tiles(S, Cl, Ch, K, out_bytes,
                                                 spatial_tile_cap)
    nS = S_pad // tS
    if S_pad != S:
        # Zero padding is stats-safe: padded x_low contributes exactly 0 to the
        # sums (b1 is dropped), and padded outputs are sliced off below.
        pad = ((0, 0), (0, 0), (0, S_pad - S))
        xl = jnp.pad(xl, pad)
        xh = jnp.pad(xh, pad)

    vmem_cap = _vmem_capacity_bytes()
    vmem_limit = int(min(0.9 * vmem_cap,
                         max(32 << 20, working_set + (16 << 20))))

    # Split the stats reduction so it shards across both v7x TensorCores even
    # for B == 1 (harmless on 1-TC chips); partials combined by a tiny XLA sum.
    n_split = 2 if (nS % 2 == 0 and nS >= 2) else 1
    npers = nS // n_split

    cparams_stats = pltpu.CompilerParams(
        dimension_semantics=("parallel", "parallel", "arbitrary"),
        vmem_limit_bytes=vmem_limit)
    cparams_main = pltpu.CompilerParams(
        dimension_semantics=("parallel", "parallel"),
        vmem_limit_bytes=vmem_limit)

    # ---- Pass 1: streaming per-(batch, channel) sum / sum-of-squares. ----
    psum, psq = pl.pallas_call(
        up_stats_kernel,
        out_shape=(jax.ShapeDtypeStruct((B * n_split, Ch, 1), jnp.float32),
                   jax.ShapeDtypeStruct((B * n_split, Ch, 1), jnp.float32)),
        grid_spec=pltpu.PrefetchScalarGridSpec(
            num_scalar_prefetch=0,
            grid=(B, n_split, npers),
            in_specs=[
                pl.BlockSpec((1, Cl, tS), lambda b, p, s: (b, 0, p * npers + s)),
                pl.BlockSpec((Ch, Cl), lambda b, p, s: (0, 0)),
            ],
            out_specs=[
                pl.BlockSpec((1, Ch, 1), lambda b, p, s: (b * n_split + p, 0, 0)),
                pl.BlockSpec((1, Ch, 1), lambda b, p, s: (b * n_split + p, 0, 0)),
            ],
        ),
        compiler_params=cparams_stats,
    )(xl, w1)

    # Hoisted normalization constants: tiny (B, Ch) f32 op done once, reused by
    # every spatial tile of pass 2 (no per-tile rsqrt / broadcast chains).
    ssum = psum.reshape(B, n_split, Ch, 1).sum(axis=1)
    ssq = psq.reshape(B, n_split, Ch, 1).sum(axis=1)
    inv_s = jnp.float32(1.0 / S)                      # true S, not padded
    mean = ssum * inv_s
    # TODO(synk): E[h^2] - mean^2 in f32 can lose precision when |mean| >> std
    # over very large volumes; a shifted-moment / Welford combine would fix it.
    var = jnp.maximum(ssq * inv_s - mean * mean, 0.0)
    scale = gamma * jax.lax.rsqrt(var + EPS)          # (B, Ch, 1)
    shift = beta - mean * scale                       # (B, Ch, 1)

    # ---- Pass 2: normalize + LeakyReLU + skip-add + folded transposed conv. ----
    out = pl.pallas_call(
        up_main_kernel,
        out_shape=jax.ShapeDtypeStruct((B, K * Ch, S_pad), out_dtype),
        grid_spec=pltpu.PrefetchScalarGridSpec(
            num_scalar_prefetch=0,
            grid=(B, nS),
            in_specs=[
                pl.BlockSpec((1, Cl, tS), lambda b, s: (b, 0, s)),
                pl.BlockSpec((1, Ch, tS), lambda b, s: (b, 0, s)),
                pl.BlockSpec((1, Ch, 1), lambda b, s: (b, 0, 0)),
                pl.BlockSpec((1, Ch, 1), lambda b, s: (b, 0, 0)),
                pl.BlockSpec((Ch, Cl), lambda b, s: (0, 0)),
                pl.BlockSpec((K * Ch, Ch), lambda b, s: (0, 0)),
                pl.BlockSpec((K * Ch, 1), lambda b, s: (0, 0)),
            ],
            out_specs=pl.BlockSpec((1, K * Ch, tS), lambda b, s: (b, 0, s)),
        ),
        compiler_params=cparams_main,
    )(xl, xh, scale, shift, w1, wt2, bt)

    # Scatter the 8 non-overlapping taps into the upsampled NCDHW volume:
    #   out[b, (co,kd,kh,kw), (d,h,w)] -> y[b, co, 2d+kd, 2h+kh, 2w+kw]
    # bf16 output halves this fixup's HBM traffic; per-channel tap grouping
    # keeps its reads contiguous per output channel.
    # TODO(synk): the kw<->w element interleave still forces this wrapper-side
    # permute of the full 8x volume; an in-kernel lane pair-interleave (perfect
    # shuffle / bf16 pair-pack) would reduce it to a coarse non-minor permute.
    if S_pad != S:
        out = out[:, :, :S]
    y = out.reshape(B, Ch, stride, stride, stride, D, H, W)
    y = jnp.transpose(y, (0, 1, 5, 2, 6, 3, 7, 4))
    return y.reshape(B, Ch, D * stride, H * stride, W * stride)


def up_reference(x_low, x_high, params, *, stride=2):
    """Pure-JAX f32 reference mirroring the PyTorch semantics (NCDHW)."""
    B, Cl, D, H, W = x_low.shape
    Ch = x_high.shape[1]
    w1 = params["w1"].reshape(Ch, Cl)
    h = jnp.einsum("bcdhw,oc->bodhw", x_low, w1) \
        + params["b1"][None, :, None, None, None]
    mean = jnp.mean(h, axis=(2, 3, 4), keepdims=True)
    var = jnp.mean((h - mean) ** 2, axis=(2, 3, 4), keepdims=True)
    hn = (h - mean) / jnp.sqrt(var + EPS)
    hn = hn * params["gamma"][None, :, None, None, None] \
         + params["beta"][None, :, None, None, None]
    hn = jnp.where(hn >= 0, hn, NEG_SLOPE * hn)
    hn = hn + x_high
    y = jnp.einsum("bcdhw,coijk->bodihjwk", hn, params["wt"])
    y = y.reshape(B, Ch, D * stride, H * stride, W * stride)
    return y + params["bt"][None, :, None, None, None]


if __name__ == "__main__":
    # Small shapes consistent with Up(low_channels=8, high_channels=4, ...)
    B, Cl, Ch = 2, 8, 4
    D = H = W = 8
    stride = 2

    key = jax.random.PRNGKey(0)
    k1, k2, k3, k4, k5, k6, k7 = jax.random.split(key, 7)

    x_low = jax.random.normal(k1, (B, Cl, D, H, W), jnp.float32)
    x_high = jax.random.normal(k2, (B, Ch, D, H, W), jnp.float32)

    params = {
        # extractor[0]: Conv3d(Cl, Ch, 1, 1, 0)
        "w1": jax.random.normal(k3, (Ch, Cl, 1, 1, 1), jnp.float32) * 0.06,
        # b1 is mathematically cancelled by InstanceNorm; nonzero to prove it.
        "b1": 0.05 * jax.random.normal(k7, (Ch,), jnp.float32),
        # InstanceNorm3d(Ch, affine=True), perturbed to exercise the affine path
        "gamma": 1.0 + 0.1 * jax.random.normal(k4, (Ch,), jnp.float32),
        "beta": 0.1 * jax.random.normal(k5, (Ch,), jnp.float32),
        # ConvTranspose3d(Ch, Ch, kernel=2, stride=2)
        "wt": jax.random.normal(k6, (Ch, Ch, stride, stride, stride), jnp.float32) * 0.06,
        "bt": 0.01 * jnp.arange(Ch, dtype=jnp.float32),
    }

    # spatial_tile_cap=256 forces multiple spatial tiles (S=512 -> 2 tiles) so
    # the streaming two-pass InstanceNorm and the split stats path are exercised.
    y = up_forward(x_low, x_high, params, stride=stride, spatial_tile_cap=256)
    y = jax.block_until_ready(y)

    y_ref = up_reference(x_low, x_high, params, stride=stride)
    assert y.shape == (B, Ch, D * stride, H * stride, W * stride), y.shape
    y_f32 = y.astype(jnp.float32)
    max_err = float(jnp.max(jnp.abs(y_f32 - y_ref)))
    # bf16 I/O on the heavy path => 2e-2 tolerance vs. the f32 reference.
    assert jnp.allclose(y_f32, y_ref, rtol=2e-2, atol=2e-2), max_err

    print("KERNEL_OK")
</pallas_src>

<mosaic_0001>
module attributes {stable_mosaic.version = 11 : i64} {
  func.func @up_stats_kernel(%arg0: i32, %arg1: i32, %arg2: i32, %arg3: memref<1x8x256xf32, #tpu.memory_space<vmem>>, %arg4: memref<4x8xbf16, #tpu.memory_space<vmem>>, %arg5: memref<1x4x1xf32, #tpu.memory_space<vmem>>, %arg6: memref<1x4x1xf32, #tpu.memory_space<vmem>>) attributes {dimension_semantics = [#tpu.dimension_semantics<parallel>, #tpu.dimension_semantics<parallel>, #tpu.dimension_semantics<arbitrary>], iteration_bounds = array<i64: 2, 2, 1>, scalar_prefetch = 0 : i64, scratch_operands = 0 : i64, tpu.core_type = #tpu.core_type<tc>, window_params = [{transform_indices = @transform_0, window_bounds = array<i64: 1, 8, 256>}, {pipeline_mode = #tpu.pipeline_mode<synchronous>, transform_indices = @transform_1, window_bounds = array<i64: 4, 8>}, {transform_indices = @transform_2, window_bounds = array<i64: 1, 4, 1>}, {transform_indices = @transform_3, window_bounds = array<i64: 1, 4, 1>}]} {
    %c0_i32 = arith.constant 0 : i32
    %0 = arith.cmpi eq, %arg2, %c0_i32 : i32
    %1 = arith.extui %0 : i1 to i32
    %c0_i32_0 = arith.constant 0 : i32
    %2 = arith.cmpi ne, %1, %c0_i32_0 : i32
    scf.if %2 {
      %cst_19 = arith.constant 0.000000e+00 : f32
      %25 = vector.broadcast %cst_19 : f32 to vector<1x4x1xf32>
      %c0_20 = arith.constant 0 : index
      %c0_21 = arith.constant 0 : index
      %c0_22 = arith.constant 0 : index
      %26 = vector.load %arg5[%c0_20, %c0_21, %c0_22] : memref<1x4x1xf32, #tpu.memory_space<vmem>>, vector<1x4x1xf32>
      tpu.vector_store %arg5[%c0_20, %c0_21, %c0_22], %25 {strides = array<i32>} : memref<1x4x1xf32, #tpu.memory_space<vmem>>, vector<1x4x1xf32>,
      %cst_23 = arith.constant 0.000000e+00 : f32
      %27 = vector.broadcast %cst_23 : f32 to vector<1x4x1xf32>
      %c0_24 = arith.constant 0 : index
      %c0_25 = arith.constant 0 : index
      %c0_26 = arith.constant 0 : index
      %28 = vector.load %arg6[%c0_24, %c0_25, %c0_26] : memref<1x4x1xf32, #tpu.memory_space<vmem>>, vector<1x4x1xf32>
      tpu.vector_store %arg6[%c0_24, %c0_25, %c0_26], %27 {strides = array<i32>} : memref<1x4x1xf32, #tpu.memory_space<vmem>>, vector<1x4x1xf32>,
    } else {
    }
    %c0 = arith.constant 0 : index
    %c0_1 = arith.constant 0 : index
    %3 = vector.load %arg4[%c0, %c0_1] : memref<4x8xbf16, #tpu.memory_space<vmem>>, vector<4x8xbf16>
    %c0_2 = arith.constant 0 : index
    %c0_3 = arith.constant 0 : index
    %c0_4 = arith.constant 0 : index
    %4 = vector.load %arg3[%c0_2, %c0_3, %c0_4] : memref<1x8x256xf32, #tpu.memory_space<vmem>>, vector<1x8x256xf32>
    %5 = vector.shape_cast %4 : vector<1x8x256xf32> to vector<8x256xf32>
    %6 = arith.truncf %5 : vector<8x256xf32> to vector<8x256xbf16>
    %cst = arith.constant dense<0.000000e+00> : vector<4x256xf32>
    %7 = tpu.matmul %3, %6, %cst {dimension_numbers = #tpu.dot_dimension_numbers<[1], [0], [0], [1], [0, 0, 1, 1], [], []>} : vector<4x8xbf16>, vector<8x256xbf16>, vector<4x256xf32> -> vector<4x256xf32>
    %c0_5 = arith.constant 0 : index
    %c0_6 = arith.constant 0 : index
    %c0_7 = arith.constant 0 : index
    %8 = vector.load %arg5[%c0_5, %c0_6, %c0_7] : memref<1x4x1xf32, #tpu.memory_space<vmem>>, vector<1x4x1xf32>
    %9 = vector.shape_cast %8 : vector<1x4x1xf32> to vector<4x1xf32>
    %cst_8 = arith.constant dense<0.000000e+00> : vector<4xf32>
    %10 = vector.multi_reduction <add>, %7, %cst_8 [1] : vector<4x256xf32> to vector<4xf32>
    %11 = vector.shape_cast %10 : vector<4xf32> to vector<4x1xf32>
    %12 = arith.addf %9, %11 : vector<4x1xf32>
    %c0_9 = arith.constant 0 : index
    %c0_10 = arith.constant 0 : index
    %c0_11 = arith.constant 0 : index
    %13 = vector.load %arg5[%c0_9, %c0_10, %c0_11] : memref<1x4x1xf32, #tpu.memory_space<vmem>>, vector<1x4x1xf32>
    %14 = vector.shape_cast %13 : vector<1x4x1xf32> to vector<4x1xf32>
    %15 = vector.shape_cast %12 : vector<4x1xf32> to vector<1x4x1xf32>
    tpu.vector_store %arg5[%c0_9, %c0_10, %c0_11], %15 {strides = array<i32>} : memref<1x4x1xf32, #tpu.memory_space<vmem>>, vector<1x4x1xf32>,
    %c0_12 = arith.constant 0 : index
    %c0_13 = arith.constant 0 : index
    %c0_14 = arith.constant 0 : index
    %16 = vector.load %arg6[%c0_12, %c0_13, %c0_14] : memref<1x4x1xf32, #tpu.memory_space<vmem>>, vector<1x4x1xf32>
    %17 = vector.shape_cast %16 : vector<1x4x1xf32> to vector<4x1xf32>
    %18 = arith.mulf %7, %7 : vector<4x256xf32>
    %cst_15 = arith.constant dense<0.000000e+00> : vector<4xf32>
    %19 = vector.multi_reduction <add>, %18, %cst_15 [1] : vector<4x256xf32> to vector<4xf32>
    %20 = vector.shape_cast %19 : vector<4xf32> to vector<4x1xf32>
    %21 = arith.addf %17, %20 : vector<4x1xf32>
    %c0_16 = arith.constant 0 : index
    %c0_17 = arith.constant 0 : index
    %c0_18 = arith.constant 0 : index
    %22 = vector.load %arg6[%c0_16, %c0_17, %c0_18] : memref<1x4x1xf32, #tpu.memory_space<vmem>>, vector<1x4x1xf32>
    %23 = vector.shape_cast %22 : vector<1x4x1xf32> to vector<4x1xf32>
    %24 = vector.shape_cast %21 : vector<4x1xf32> to vector<1x4x1xf32>
    tpu.vector_store %arg6[%c0_16, %c0_17, %c0_18], %24 {strides = array<i32>} : memref<1x4x1xf32, #tpu.memory_space<vmem>>, vector<1x4x1xf32>,
    return
  }
  func.func @transform_0(%arg0: i32, %arg1: i32, %arg2: i32) -> (i32, i32, i32) {
    %c1_i32 = arith.constant 1 : i32
    %0 = arith.muli %arg1, %c1_i32 : i32
    %1 = arith.addi %0, %arg2 : i32
    %c0_i32 = arith.constant 0 : i32
    %c0_i32_0 = arith.constant 0 : i32
    return %arg0, %c0_i32, %1 : i32, i32, i32
  }
  func.func @transform_1(%arg0: i32, %arg1: i32, %arg2: i32) -> (i32, i32) {
    %c0_i32 = arith.constant 0 : i32
    %c0_i32_0 = arith.constant 0 : i32
    %c0_i32_1 = arith.constant 0 : i32
    return %c0_i32, %c0_i32_0 : i32, i32
  }
  func.func @transform_2(%arg0: i32, %arg1: i32, %arg2: i32) -> (i32, i32, i32) {
    %c2_i32 = arith.constant 2 : i32
    %0 = arith.muli %arg0, %c2_i32 : i32
    %1 = arith.addi %0, %arg1 : i32
    %c0_i32 = arith.constant 0 : i32
    %c0_i32_0 = arith.constant 0 : i32
    %c0_i32_1 = arith.constant 0 : i32
    return %1, %c0_i32, %c0_i32_0 : i32, i32, i32
  }
  func.func @transform_3(%arg0: i32, %arg1: i32, %arg2: i32) -> (i32, i32, i32) {
    %c2_i32 = arith.constant 2 : i32
    %0 = arith.muli %arg0, %c2_i32 : i32
    %1 = arith.addi %0, %arg1 : i32
    %c0_i32 = arith.constant 0 : i32
    %c0_i32_0 = arith.constant 0 : i32
    %c0_i32_1 = arith.constant 0 : i32
    return %1, %c0_i32, %c0_i32_0 : i32, i32, i32
  }
}

</mosaic_0001>

<llo_original>
// kernel: tpu_custom_call.1
$region0: #{tpu_custom_call.1}
  #allocation0 [shape = 'u32[]', space=smem, size = 0x4, offset = 0x4, fixed_abs, tag = 'smem constant byte address 0x4 - core index']
  #allocation1 [shape = 'u32[144,128]{1,0:T(1,128)}', space=vmem, size = 0x12000, scoped, tag = 'internal scratch']
  %s0 = inlined_call_operand.hbm [shape: f32[2,8,512], index: 0, kind: input, shape index: {}]
  %s1 = inlined_call_operand.vmem [shape: bf16[4,8], index: 1, kind: input, shape index: {}]
  %s2 = inlined_call_operand.vmem [shape: f32[4,4,1], index: 2, kind: output, shape index: {0}]
  %s3 = inlined_call_operand.vmem [shape: f32[4,4,1], index: 3, kind: output, shape index: {1}]
  %4 = xla_tuple %s2, %s3
  %s5 = sld [smem:[#allocation0]]
  $region57: #{tpu_custom_call.1} parent=0
    _
  %s7 = ssub.s32 1, %s5
  %s8 = scalar_select 0, %s7, %s5
  $region1: #{tpu_custom_call.1} parent=0
    #allocation2 [shape = 'u8[16384]{0}', space=vmem, size = 0x4000, scoped, tag = 'input window, operand 0']
    #allocation3 [shape = 's32[2]{0}', space=sflag, size = 0x8, scoped, tag = 'scoped memory for tpu_custom_call.1']
    %9 = vsyncpa [#allocation3], 0
    %s10 = scalar_lea.sflag [#allocation3], 1
    %11 = vsyncpa %s10, 0
    loop: start=0, step=1, limit=6
    $region2: #{tpu_custom_call.1} parent=1 // loop_pre_header
      _
    $region3: #{tpu_custom_call.1} parent=1 // loop_header
      %s13 = sphi 0, %s17
      %p14 = scmp.ge.s32.totalorder %s13, 6
      %s20 = sphi 0, %s39
      %s21 = sphi 0, %s35
      %s22 = sphi 0, %s31
      %s23 = sphi 0, %s20
      %s24 = sphi 0, %s21
      %s25 = sphi 0, %s22
      %s26 = sphi 0, %s23
      %s27 = sphi 0, %s24
      %s28 = sphi 0, %s25
      %s46 = sphi 0, %s48
      %s49 = sphi 0, %s46
      %s50 = sphi 0, %s49
      %s66 = sphi 0, %s50
      %s70 = sphi 0, %s70
      %s72 = sphi 0, %s70
      %s73 = sphi 0, %s72
      %s87 = sphi 0, %s73
      %s97 = sphi 0, %s99
      %s100 = sphi 0, %s97
      %s101 = sphi 0, %s100
      %s117 = sphi 0, %s101
      %s127 = sphi 0, %s129
      %s130 = sphi 0, %s127
      %s131 = sphi 0, %s130
      %s147 = sphi 0, %s131
    $region4: #{tpu_custom_call.1} parent=1 // loop_header_branch
      %16 = sbr.rel (%p14) target = $region8
    $region5: #{tpu_custom_call.1} parent=1 // loop_body
      %s18 = ssub.s32 %s13, 1
      %s19 = ssub.s32 %s13, 2
      %s29 = sadd.s32 1, %s22
      %p30 = scmp.ge.s32.totalorder %s29, 1
      %s31 = scalar_select %p30, 0, %s29
      %s32 = sadd.s32 1, %s21
      %s33 = scalar_select %p30, %s32, %s21
      %p34 = scmp.ge.s32.totalorder %s33, 2
      %s35 = scalar_select %p34, 0, %s33
      %s36 = sadd.s32 1, %s20
      %s37 = scalar_select %p34, %s36, %s20
      %p38 = scmp.ge.s32.totalorder %s37, 2
      %s39 = scalar_select %p38, 0, %s37
      %s40 = sadd.s32 %s21, %s22
      %s41 = sadd.s32 %s35, %s31
      %s42 = ssub.s32 %s20, %s39
      %s43 = ssub.s32 %s40, %s41
      %s44 = sor.u32 %s42, %s43
      %p45 = scmp.eq.s32.totalorder %s44, 0
      %s47 = sadd.s32 %s46, 1
      %s48 = scalar_select %p45, %s46, %s47
      %p51 = pneg %p45
      %p52 = scmp.eq.s32.totalorder %s13, 3
      %p53 = por %p51, %p52
      %p54 = scmp.ne.s32.totalorder %s46, %s49
      %p55 = scmp.eq.s32.totalorder %s13, 0
      %p56 = por %p54, %p55
      %p57 = scmp.ne.s32.totalorder %s46, %s49
      %p58 = scmp.eq.s32.totalorder %s18, 3
      %p59 = por %p57, %p58
      %p60 = scmp.ne.s32.totalorder %s49, %s50
      %p61 = scmp.eq.s32.totalorder %s18, 0
      %p62 = por %p60, %p61
      %p63 = scmp.ne.s32.totalorder %s49, %s50
      %p64 = scmp.eq.s32.totalorder %s19, 3
      %p65 = por %p63, %p64
      %p67 = scmp.ne.s32.totalorder %s50, %s66
      %p68 = scmp.eq.s32.totalorder %s19, 0
      %p69 = por %p67, %p68
      %s71 = sadd.s32 %s70, 1
      %p74 = scmp.eq.s32.totalorder %s13, 3
      %p75 = scmp.ne.s32.totalorder %s70, %s72
      %p76 = scmp.eq.s32.totalorder %s13, 0
      %p77 = por %p75, %p76
      %p78 = scmp.ne.s32.totalorder %s70, %s72
      %p79 = scmp.eq.s32.totalorder %s18, 3
      %p80 = por %p78, %p79
      %p81 = scmp.ne.s32.totalorder %s72, %s73
      %p82 = scmp.eq.s32.totalorder %s18, 0
      %p83 = por %p81, %p82
      %p84 = scmp.ne.s32.totalorder %s72, %s73
      %p85 = scmp.eq.s32.totalorder %s19, 3
      %p86 = por %p84, %p85
      %p88 = scmp.ne.s32.totalorder %s73, %s87
      %p89 = scmp.eq.s32.totalorder %s19, 0
      %p90 = por %p88, %p89
      %s91 = smul.u32 %s20, 2
      %s92 = sadd.s32 %s91, %s21
      %s93 = smul.u32 %s39, 2
      %s94 = sadd.s32 %s93, %s35
      %s95 = ssub.s32 %s92, %s94
      %p96 = scmp.eq.s32.totalorder %s95, 0
      %s98 = sadd.s32 %s97, 1
      %s99 = scalar_select %p96, %s97, %s98
      %p102 = pneg %p96
      %p103 = scmp.eq.s32.totalorder %s13, 3
      %p104 = por %p102, %p103
      %p105 = scmp.ne.s32.totalorder %s97, %s100
      %p106 = scmp.eq.s32.totalorder %s13, 0
      %p107 = por %p105, %p106
      %p108 = scmp.ne.s32.totalorder %s97, %s100
      %p109 = scmp.eq.s32.totalorder %s18, 3
      %p110 = por %p108, %p109
      %p111 = scmp.ne.s32.totalorder %s100, %s101
      %p112 = scmp.eq.s32.totalorder %s18, 0
      %p113 = por %p111, %p112
      %p114 = scmp.ne.s32.totalorder %s100, %s101
      %p115 = scmp.eq.s32.totalorder %s19, 3
      %p116 = por %p114, %p115
      %p118 = scmp.ne.s32.totalorder %s101, %s117
      %p119 = scmp.eq.s32.totalorder %s19, 0
      %p120 = por %p118, %p119
      %s121 = smul.u32 %s20, 2
      %s122 = sadd.s32 %s121, %s21
      %s123 = smul.u32 %s39, 2
      %s124 = sadd.s32 %s123, %s35
      %s125 = ssub.s32 %s122, %s124
      %p126 = scmp.eq.s32.totalorder %s125, 0
      %s128 = sadd.s32 %s127, 1
      %s129 = scalar_select %p126, %s127, %s128
      %p132 = pneg %p126
      %p133 = scmp.eq.s32.totalorder %s13, 3
      %p134 = por %p132, %p133
      %p135 = scmp.ne.s32.totalorder %s127, %s130
      %p136 = scmp.eq.s32.totalorder %s13, 0
      %p137 = por %p135, %p136
      %p138 = scmp.ne.s32.totalorder %s127, %s130
      %p139 = scmp.eq.s32.totalorder %s18, 3
      %p140 = por %p138, %p139
      %p141 = scmp.ne.s32.totalorder %s130, %s131
      %p142 = scmp.eq.s32.totalorder %s18, 0
      %p143 = por %p141, %p142
      %p144 = scmp.ne.s32.totalorder %s130, %s131
      %p145 = scmp.eq.s32.totalorder %s19, 3
      %p146 = por %p144, %p145
      %p148 = scmp.ne.s32.totalorder %s131, %s147
      %p149 = scmp.eq.s32.totalorder %s19, 0
      %p150 = por %p148, %p149
      %p151 = scmp.le.s32.totalorder 1, %s13
      %p152 = scmp.lt.s32.totalorder %s13, 5
      %p153 = pnand %p151, %p152
      %p154 = pneg %p153
      // Predicated region
      $region9: #{tpu_custom_call.1} parent=5 // pred_check
        _
      $region10: #{tpu_custom_call.1} parent=5 // pred_check_branch
        %156 = sbr.rel (%p153) target = $region12
      $region11: #{tpu_custom_call.1} parent=5 // pred_region
        %s157 = ssub.s32 %s13, 1
        // Predicated region
        $region13: #{tpu_custom_call.1} parent=11 // pred_check
          %p158 = pneg %p83
        $region14: #{tpu_custom_call.1} parent=11 // pred_check_branch
          %160 = sbr.rel (%p158) target = $region16
        $region15: #{tpu_custom_call.1} parent=11 // pred_region
          _
        $region16: #{tpu_custom_call.1} parent=11 // pred_fallthru
          _
      $region12: #{tpu_custom_call.1} parent=5 // pred_fallthru
        _
      %p161 = scmp.lt.s32.totalorder %s13, 4
      // Predicated region
      $region17: #{tpu_custom_call.1} parent=5 // pred_check
        %p162 = pneg %p161
      $region18: #{tpu_custom_call.1} parent=5 // pred_check_branch
        %164 = sbr.rel (%p162) target = $region20
      $region19: #{tpu_custom_call.1} parent=5 // pred_region
        // Predicated region
        $region21: #{tpu_custom_call.1} parent=19 // pred_check
          %p165 = pneg %p56
        $region22: #{tpu_custom_call.1} parent=19 // pred_check_branch
          %167 = sbr.rel (%p165) target = $region24
        $region23: #{tpu_custom_call.1} parent=19 // pred_region
          %s168 = sand.u32 %s46, 1
          %s169 = scalar_lea.sflag [#allocation3], %s168
          %s170 = sand.u32 %s46, 1
          %s171 = smul.addr %s170, 16
          %s172 = scalar_lea.vmem [#allocation2], %s171
          %s173 = sadd.s32 %s21, %s22
          %s174 = smul.u32 2, %s173
          %s176 = ssub.s32 256, 256
          %177 = vsyncadd %s169, %s176
          %s178 = smul.addr %s20, 4
          %s179 = sadd.s32 %s174, %s178
          %s180 = smul.addr %s179, 128
          %s181 = scalar_lea.hbm %s0, %s180
          %s183 = sshll.u32 %s172, 4
          %s184 = int_to_ptr.vmem [resolvable:$true] %s183
          %186 = dma.hbm_to_vmem [thread:$0]  %s181, 256, %s184, %s169
        $region24: #{tpu_custom_call.1} parent=19 // pred_fallthru
          _
      $region20: #{tpu_custom_call.1} parent=5 // pred_fallthru
        _
      %p187 = scmp.le.s32.totalorder 1, %s13
      %p188 = scmp.lt.s32.totalorder %s13, 5
      %p189 = pnand %p187, %p188
      %p190 = pneg %p189
      // Predicated region
      $region25: #{tpu_custom_call.1} parent=5 // pred_check
        _
      $region26: #{tpu_custom_call.1} parent=5 // pred_check_branch
        %192 = sbr.rel (%p189) target = $region28
      $region27: #{tpu_custom_call.1} parent=5 // pred_region
        %s193 = ssub.s32 %s13, 1
        %s194 = sand.u32 %s49, 1
        %s195 = scalar_lea.sflag [#allocation3], %s194
        %s196 = sand.u32 %s49, 1
        %s197 = smul.addr %s196, 16
        %s198 = scalar_lea.vmem [#allocation2], %s197
        // Predicated region
        $region29: #{tpu_custom_call.1} parent=27 // pred_check
          %p199 = pneg %p62
        $region30: #{tpu_custom_call.1} parent=27 // pred_check_branch
          %201 = sbr.rel (%p199) target = $region32
        $region31: #{tpu_custom_call.1} parent=27 // pred_region
          %202 = dma.done %s195, 256
        $region32: #{tpu_custom_call.1} parent=27 // pred_fallthru
          _
        %s203 = sand.u32 %s49, 1
        %s204 = scalar_lea.sflag [#allocation3], %s203
        %s205 = sand.u32 %s49, 1
        %s206 = smul.addr %s205, 16
        %s207 = scalar_lea.vmem [#allocation2], %s206
        %p208 = pneg %p62
        %p209 = pneg %p59
        %p210 = pneg %p83
        %p211 = pneg %p80
        %p212 = pneg %p113
        %p213 = pneg %p110
        %s214 = smul.u32 %s23, 2
        %s215 = sadd.s32 %s214, %s24
        %p216 = scmp.lt.s32.totalorder %s215, 3
        %s217 = scalar_select %p216, %s215, 3
        %s218 = smul.addr %s217, 4
        %s219 = scalar_lea.vmem %s2, %s218
        %p220 = pneg %p143
        %p221 = pneg %p140
        %s222 = smul.u32 %s23, 2
        %s223 = sadd.s32 %s222, %s24
        %p224 = scmp.lt.s32.totalorder %s223, 3
        %s225 = scalar_select %p224, %s223, 3
        %s226 = smul.addr %s225, 4
        %s227 = scalar_lea.vmem %s3, %s226
        %s228 = sadd.s32 %s24, %s25
        %s229 = smul.u32 2, %s228
        %s230 = smul.u32 %s23, 2
        %s231 = sadd.s32 %s230, %s24
        %p232 = scmp.lt.s32.totalorder %s231, 3
        %s233 = scalar_select %p232, %s231, 3
        %s234 = smul.addr %s233, 4
        %s235 = scalar_lea.vmem %s2, %s234
        %s236 = smul.u32 %s23, 2
        %s237 = sadd.s32 %s236, %s24
        %s238 = smul.u32 %s23, 2
        %s239 = sadd.s32 %s238, %s24
        %p240 = scmp.lt.s32.totalorder %s239, 3
        %s241 = scalar_select %p240, %s239, 3
        %s242 = smul.addr %s241, 4
        %s243 = scalar_lea.vmem %s3, %s242
        %s244 = smul.u32 %s23, 2
        %s245 = sadd.s32 %s244, %s24
        %p247 = scmp.eq.s32.totalorder %s25, 0
        // Predicated region
        $region33: #{tpu_custom_call.1} parent=27 // pred_check
          %p248 = pneg %p247
        $region34: #{tpu_custom_call.1} parent=27 // pred_check_branch
          %250 = sbr.rel (%p248) target = $region36
        $region35: #{tpu_custom_call.1} parent=27 // pred_region
          %vm251 = vcmask 3072
          %252 = vst.msk [vmem:[%s235] sm:$0xf] %vm251, 0.0
          %253 = vst.msk [vmem:[%s243] sm:$0xf] %vm251, 0.0
        $region36: #{tpu_custom_call.1} parent=27 // pred_fallthru
          _
        %v254 = vld [vmem:[%s1] sm:$0x3]
        %v255 = vld [vmem:[%s198] sm:$0xff]
        %v256 = vld [vmem:[%s198 + $0x8] sm:$0xff]
        %v257 = vpack.c.bf16 %v255, %v255
        %v258 = vpack.c.bf16 %v256, %v256
        %vm259 = vcmask 64512
        %v261 = vsel %vm259, %v254, 0
        %vm263 = vcmask 1043456
        %v265 = vsel %vm263, %v257, 0
        %v268 = vsel %vm263, %v258, 0
        %270 = vmatprep.subr.bf16.mxu0 %v268
        %271 = vmatpush1.bf16.msra.mxu0 %v265
        %272 = vmatprep.subr.bf16.mxu0 0
        %273 = vmatpush1.bf16.msra.mxu0 0
        %274 = vmatprep.subr.bf16.mxu0 0
        %275 = vmatpush1.bf16.msra.mxu0 0
        %276 = vmatprep.subr.bf16.mxu0 0
        %277 = vmatpush1.bf16.msra.mxu0 0
        %278 = vmatprep.subr.bf16.mxu0 0
        %279 = vmatpush1.bf16.msra.mxu0 0
        %280 = vmatprep.subr.bf16.mxu0 0
        %281 = vmatpush1.bf16.msra.mxu0 0
        %282 = vmatprep.subr.bf16.mxu0 0
        %283 = vmatpush1.bf16.msra.mxu0 0
        %284 = vmatprep.subr.bf16.mxu0 0
        %285 = vmatpush1.bf16.msra.mxu0 0
        %286 = vmatprep.subr.bf16.mxu0 0
        %287 = vmatpush1.bf16.msra.mxu0 0
        %288 = vmatprep.subr.bf16.mxu0 0
        %289 = vmatpush1.bf16.msra.mxu0 0
        %290 = vmatprep.subr.bf16.mxu0 0
        %291 = vmatpush1.bf16.msra.mxu0 0
        %292 = vmatprep.subr.bf16.mxu0 0
        %293 = vmatpush1.bf16.msra.mxu0 0
        %294 = vmatprep.subr.bf16.mxu0 0
        %295 = vmatpush1.bf16.msra.mxu0 0
        %296 = vmatprep.subr.bf16.mxu0 0
        %297 = vmatpush1.bf16.msra.mxu0 0
        %298 = vmatprep.subr.bf16.mxu0 0
        %299 = vmatpush1.bf16.msra.mxu0 0
        %300 = vmatprep.subr.bf16.mxu0 0
        %301 = vmatpush1.bf16.msra.mxu0 0
        %302 = vmatprep.mubr.bf16.mxu0 0
        %303 = vmatmul.mubr.bf16.gmra.mrb[0].mxu0 %v261
        %v304 = vpop.f32.mrb[0].mxu0
        %v305 = vadd.f32 0.0, %v304
        %v306 = vpop.f32.mrb[0].mxu0
        %v307 = vadd.f32 0.0, %v306
        %v308 = vpop.f32.mrb[0].mxu0
        %v309 = vpop.f32.mrb[0].mxu0
        %310 = vdwg.mxu0
        %v311 = vld [vmem:[%s235] sm:$0xf]
        %v312 = vsel %vm263, %v305, 0.0
        %v313 = vsel %vm263, %v307, 0.0
        %v314 = vadd.f32 %v312, %v313
        %315 = vadd.xlane.f32.xlu0 %v314
        %v316 = vpop.xlane.xlu0 %315
        %v317 = vadd.f32 %v311, %v316
        %vm318 = vcmask 3072
        %319 = vst.msk [vmem:[%s235] sm:$0xf] %vm318, %v317
        %v320 = vld [vmem:[%s243] sm:$0xf]
        %v321 = vmul.f32 %v305, %v305
        %v322 = vmul.f32 %v307, %v307
        %v323 = vsel %vm263, %v321, 0.0
        %v324 = vsel %vm263, %v322, 0.0
        %v325 = vadd.f32 %v323, %v324
        %326 = vadd.xlane.f32.xlu0 %v325
        %v327 = vpop.xlane.xlu0 %326
        %v328 = vadd.f32 %v320, %v327
        %329 = vst.msk [vmem:[%s243] sm:$0xf] %vm318, %v328
        %s330 = smul.u32 %s23, 2
        %s331 = sadd.s32 %s330, %s24
        %p332 = scmp.lt.s32.totalorder %s331, 3
        %s333 = scalar_select %p332, %s331, 3
        %s334 = smul.addr %s333, 4
        %s335 = scalar_lea.vmem %s2, %s334
        %s336 = smul.u32 %s23, 2
        %s337 = sadd.s32 %s336, %s24
        %p338 = scmp.lt.s32.totalorder %s337, 3
        %s339 = scalar_select %p338, %s337, 3
        %s340 = smul.addr %s339, 4
        %s341 = scalar_lea.vmem %s3, %s340
        // Predicated region
        $region37: #{tpu_custom_call.1} parent=27 // pred_check
          %p342 = pneg %p110
        $region38: #{tpu_custom_call.1} parent=27 // pred_check_branch
          %344 = sbr.rel (%p342) target = $region40
        $region39: #{tpu_custom_call.1} parent=27 // pred_region
          %s345 = smul.u32 %s23, 2
          %s346 = sadd.s32 %s345, %s24
        $region40: #{tpu_custom_call.1} parent=27 // pred_fallthru
          _
        // Predicated region
        $region41: #{tpu_custom_call.1} parent=27 // pred_check
          %p347 = pneg %p140
        $region42: #{tpu_custom_call.1} parent=27 // pred_check_branch
          %349 = sbr.rel (%p347) target = $region44
        $region43: #{tpu_custom_call.1} parent=27 // pred_region
          %s350 = smul.u32 %s23, 2
          %s351 = sadd.s32 %s350, %s24
        $region44: #{tpu_custom_call.1} parent=27 // pred_fallthru
          _
      $region28: #{tpu_custom_call.1} parent=5 // pred_fallthru
        _
      %p352 = scmp.le.s32.totalorder 2, %s13
      // Predicated region
      $region45: #{tpu_custom_call.1} parent=5 // pred_check
        %p353 = pneg %p352
      $region46: #{tpu_custom_call.1} parent=5 // pred_check_branch
        %355 = sbr.rel (%p353) target = $region48
      $region47: #{tpu_custom_call.1} parent=5 // pred_region
        %s356 = ssub.s32 %s13, 2
        // Predicated region
        $region49: #{tpu_custom_call.1} parent=47 // pred_check
          %p357 = pneg %p116
        $region50: #{tpu_custom_call.1} parent=47 // pred_check_branch
          %359 = sbr.rel (%p357) target = $region52
        $region51: #{tpu_custom_call.1} parent=47 // pred_region
          %s360 = smul.u32 %s26, 2
          %s361 = sadd.s32 %s360, %s27
          %p362 = scmp.lt.s32.totalorder %s361, 3
          %s363 = scalar_select %p362, %s361, 3
          %s364 = smul.addr %s363, 4
          %s365 = scalar_lea.vmem %s2, %s364
        $region52: #{tpu_custom_call.1} parent=47 // pred_fallthru
          _
        // Predicated region
        $region53: #{tpu_custom_call.1} parent=47 // pred_check
          %p366 = pneg %p146
        $region54: #{tpu_custom_call.1} parent=47 // pred_check_branch
          %368 = sbr.rel (%p366) target = $region56
        $region55: #{tpu_custom_call.1} parent=47 // pred_region
          %s369 = smul.u32 %s26, 2
          %s370 = sadd.s32 %s369, %s27
          %p371 = scmp.lt.s32.totalorder %s370, 3
          %s372 = scalar_select %p371, %s370, 3
          %s373 = smul.addr %s372, 4
          %s374 = scalar_lea.vmem %s3, %s373
        $region56: #{tpu_custom_call.1} parent=47 // pred_fallthru
          _
      $region48: #{tpu_custom_call.1} parent=5 // pred_fallthru
        _
    $region6: #{tpu_custom_call.1} parent=1 // loop_footer
      %s17 = sadd.s32 1, %s13
    $region7: #{tpu_custom_call.1} parent=1 // loop_footer_branch
      %12 = sbr.rel target = $region3
    $region8: #{tpu_custom_call.1} parent=1 // loop_exit
      _
    %375 = vsyncpa [#allocation3], 1
    %s376 = scalar_lea.sflag [#allocation3], 1
    %377 = vsyncpa %s376, 1

</llo_original>
